<compile_context>
chip_gen: v7x
topology: tpu7x:2x2x1
jax: 0.10.0
libtpu: 0.0.40
codegen_flags: <defaults>
</compile_context>

<pallas_src>
import functools

import jax
import jax.numpy as jnp
from jax.experimental import pallas as pl
from jax.experimental.pallas import tpu as pltpu

LANES = 128      # vreg lane width
SUBLANES = 8     # f32 vreg sublane depth

# 4096 rows x 128 lanes x 4 B = 2 MiB per f32 input block; 2 inputs x 2 pipeline
# buffers = 8 MiB of VMEM + a 4 KiB accumulator.  Sits at the ~85%+ HBM-roofline
# plateau and fits every generation's budget (v5e 16 MiB scoped default,
# v6e 32 MiB, v7x 32 MiB scoped / 64 MiB physical).
# TODO(synk): per-generation bump (8192 rows on v6e/v7x with vmem_limit_bytes
# raised accordingly) once chip-version probing via pltpu.get_tpu_info() is
# wired in; v5e gains nothing past ~4096 rows.
MAX_ROW_TILE = 4096


def _sq_sum_kernel(p_ref, t_ref, o_ref, acc_ref, *, row_tile):
    """Accumulates sum((log(p+1) - log(t+1))^2) over the grid into o_ref[0, 0]."""
    i = pl.program_id(0)

    @pl.when(i == 0)
    def _init():
        acc_ref[...] = jnp.zeros_like(acc_ref)

    # Upcast AFTER the (possibly narrow-dtype) load: HBM traffic stays at native
    # width, while the log/EUP math runs in f32 (required on v5e: no bf16 VPU/EUP).
    p = p_ref[...].astype(jnp.float32)
    t = t_ref[...].astype(jnp.float32)
    d = jnp.log(p + 1.0) - jnp.log(t + 1.0)   # matches torch.log(x + 1) exactly
    sq = d * d

    # Fold the (row_tile, 128) tile down to a single vreg-sized (8, 128) partial
    # with pure VPU vreg-adds.  The reshape only splits the sublane axis on an
    # (8, 128)-tile boundary, so it is layout-preserving (no XLU shuffles).
    if row_tile == SUBLANES:
        partial = sq
    else:
        partial = jnp.sum(sq.reshape(row_tile // SUBLANES, SUBLANES, LANES), axis=0)
    acc_ref[...] += partial

    @pl.when(i == pl.num_programs(0) - 1)
    def _finalize():
        # Single cross-sublane/cross-lane reduce, paid exactly once per call.
        o_ref[0, 0] = jnp.sum(acc_ref[...])


def _kernel_sq_sum(p2, t2, rows_kernel, row_tile):
    """pallas_call covering the first `rows_kernel` rows of the (rows, 128) slabs."""
    n_steps = rows_kernel // row_tile
    block_bytes = row_tile * LANES * p2.dtype.itemsize
    # 2 inputs, double-buffered, plus accumulator/output/headroom.  Explicit so a
    # bigger tile never silently trips the scoped-VMEM default.
    vmem_limit = int(min(max(4 * block_bytes + (2 << 20), 16 << 20), 32 << 20))

    out = pl.pallas_call(
        functools.partial(_sq_sum_kernel, row_tile=row_tile),
        out_shape=jax.ShapeDtypeStruct((1, 1), jnp.float32),
        grid_spec=pltpu.PrefetchScalarGridSpec(
            num_scalar_prefetch=0,
            grid=(n_steps,),
            in_specs=[
                pl.BlockSpec((row_tile, LANES), lambda i: (i, 0)),
                pl.BlockSpec((row_tile, LANES), lambda i: (i, 0)),
            ],
            out_specs=pl.BlockSpec(
                (1, 1), lambda i: (0, 0), memory_space=pltpu.SMEM
            ),
            scratch_shapes=[pltpu.VMEM((SUBLANES, LANES), jnp.float32)],
        ),
        # Output/accumulator are resident across the reduction grid axis.
        # TODO(synk): on v7x (2 TensorCores) add a leading size-2 "parallel"
        # grid axis with per-core (8,128) partial-sum outputs combined in the
        # wrapper; single-TC generations (v5e/v6e) gain nothing from it.
        compiler_params=pltpu.CompilerParams(
            dimension_semantics=("arbitrary",),
            vmem_limit_bytes=vmem_limit,
        ),
    )(p2, t2)
    return out[0, 0]


def rmsle_loss(predict, target, *, max_row_tile=MAX_ROW_TILE):
    assert predict.shape == target.shape, (predict.shape, target.shape)
    n_elems = predict.size
    assert n_elems > 0

    p_flat = predict.reshape(-1)   # native dtype; no wrapper-side upcast copy
    t_flat = target.reshape(-1)

    rows_total = n_elems // LANES
    rows_fit = rows_total - rows_total % SUBLANES   # rows usable by the kernel

    if rows_fit == 0:
        # Tiny input (< 1024 elements): pad with zeros up to one (8, 128) tile.
        # log(0+1) - log(0+1) = 0, so the pad contributes nothing to the sum.
        pad = SUBLANES * LANES - n_elems
        zeros = jnp.zeros((pad,), p_flat.dtype)
        p2 = jnp.concatenate([p_flat, zeros]).reshape(SUBLANES, LANES)
        t2 = jnp.concatenate([t_flat, zeros]).reshape(SUBLANES, LANES)
        row_tile = SUBLANES
        rows_kernel = SUBLANES
        n_kernel = n_elems            # every real element is in the kernel part
    else:
        row_tile = min(rows_fit, max_row_tile)          # both multiples of 8
        rows_kernel = (rows_fit // row_tile) * row_tile  # grid-covered rows
        n_kernel = rows_kernel * LANES
        # Lane-dense (rows, 128) slab.  When n_elems is 128-aligned this reshape
        # is a free view (no HBM copy); otherwise only the sub-128 remainder is
        # sliced off and handled in the JAX tail below.
        n_lane = rows_total * LANES
        pa = p_flat if n_lane == n_elems else p_flat[:n_lane]
        ta = t_flat if n_lane == n_elems else t_flat[:n_lane]
        p2 = pa.reshape(rows_total, LANES)
        t2 = ta.reshape(rows_total, LANES)

    total = _kernel_sq_sum(p2, t2, rows_kernel, row_tile)

    if n_kernel < n_elems:
        # Ragged remainder (< row_tile*128 + 128 elements): tiny JAX epilogue
        # instead of an HBM-doubling concatenate/pad of the full arrays.
        pt = p_flat[n_kernel:].astype(jnp.float32)
        tt = t_flat[n_kernel:].astype(jnp.float32)
        dt = jnp.log(pt + 1.0) - jnp.log(tt + 1.0)
        total = total + jnp.sum(dt * dt)

    return jnp.sqrt(total / jnp.float32(n_elems))


if __name__ == "__main__":
    key = jax.random.PRNGKey(0)
    kp, kt = jax.random.split(key)
    # NCHW inputs, strictly non-negative so log(x+1) is well defined (typical
    # RMSLE usage on non-negative regression targets).
    shape = (2, 4, 16, 16)
    predict = jax.random.uniform(kp, shape, jnp.float32, minval=0.0, maxval=10.0)
    target = jax.random.uniform(kt, shape, jnp.float32, minval=0.0, maxval=10.0)

    loss = jax.jit(rmsle_loss)(predict, target)
    jax.block_until_ready(loss)

    # Reference check in plain JAX (matches the PyTorch forward).
    ref = jnp.sqrt(jnp.mean(jnp.square(jnp.log(predict + 1.0) - jnp.log(target + 1.0))))
    assert jnp.allclose(loss, ref, rtol=1e-5, atol=1e-5), (loss, ref)

    print("KERNEL_OK")
</pallas_src>

<mosaic_0001>
module attributes {stable_mosaic.version = 11 : i64} {
  func.func @_sq_sum_kernel(%arg0: i32, %arg1: memref<16x128xf32, #tpu.memory_space<vmem>>, %arg2: memref<16x128xf32, #tpu.memory_space<vmem>>, %arg3: memref<1x1xf32, #tpu.memory_space<smem>>, %arg4: memref<8x128xf32, #tpu.memory_space<vmem>>) attributes {dimension_semantics = [#tpu.dimension_semantics<arbitrary>], iteration_bounds = array<i64: 1>, scalar_prefetch = 0 : i64, scratch_operands = 1 : i64, tpu.core_type = #tpu.core_type<tc>, window_params = [{transform_indices = @transform_0, window_bounds = array<i64: 16, 128>}, {transform_indices = @transform_1, window_bounds = array<i64: 16, 128>}, {transform_indices = @transform_2, window_bounds = array<i64: 1, 1>}]} {
    %c0_i32 = arith.constant 0 : i32
    %0 = arith.cmpi eq, %arg0, %c0_i32 : i32
    %1 = arith.extui %0 : i1 to i32
    %c0_i32_0 = arith.constant 0 : i32
    %2 = arith.cmpi ne, %1, %c0_i32_0 : i32
    scf.if %2 {
      %cst_12 = arith.constant 0.000000e+00 : f32
      %21 = vector.broadcast %cst_12 : f32 to vector<8x128xf32>
      %c0_13 = arith.constant 0 : index
      %c0_14 = arith.constant 0 : index
      %22 = vector.load %arg4[%c0_13, %c0_14] : memref<8x128xf32, #tpu.memory_space<vmem>>, vector<8x128xf32>
      tpu.vector_store %arg4[%c0_13, %c0_14], %21 {strides = array<i32>} : memref<8x128xf32, #tpu.memory_space<vmem>>, vector<8x128xf32>,
    } else {
    }
    %c0 = arith.constant 0 : index
    %c0_1 = arith.constant 0 : index
    %3 = vector.load %arg1[%c0, %c0_1] : memref<16x128xf32, #tpu.memory_space<vmem>>, vector<16x128xf32>
    %c0_2 = arith.constant 0 : index
    %c0_3 = arith.constant 0 : index
    %4 = vector.load %arg2[%c0_2, %c0_3] : memref<16x128xf32, #tpu.memory_space<vmem>>, vector<16x128xf32>
    %cst = arith.constant 1.000000e+00 : f32
    %5 = vector.broadcast %cst : f32 to vector<16x128xf32>
    %6 = arith.addf %3, %5 : vector<16x128xf32>
    %7 = math.log %6 : vector<16x128xf32>
    %cst_4 = arith.constant 1.000000e+00 : f32
    %8 = vector.broadcast %cst_4 : f32 to vector<16x128xf32>
    %9 = arith.addf %4, %8 : vector<16x128xf32>
    %10 = math.log %9 : vector<16x128xf32>
    %11 = arith.subf %7, %10 : vector<16x128xf32>
    %12 = arith.mulf %11, %11 : vector<16x128xf32>
    %13 = vector.shape_cast %12 : vector<16x128xf32> to vector<2x8x128xf32>
    %cst_5 = arith.constant dense<0.000000e+00> : vector<8x128xf32>
    %14 = vector.multi_reduction <add>, %13, %cst_5 [0] : vector<2x8x128xf32> to vector<8x128xf32>
    %c0_6 = arith.constant 0 : index
    %c0_7 = arith.constant 0 : index
    %15 = vector.load %arg4[%c0_6, %c0_7] : memref<8x128xf32, #tpu.memory_space<vmem>>, vector<8x128xf32>
    %16 = arith.addf %15, %14 : vector<8x128xf32>
    %c0_8 = arith.constant 0 : index
    %c0_9 = arith.constant 0 : index
    %17 = vector.load %arg4[%c0_8, %c0_9] : memref<8x128xf32, #tpu.memory_space<vmem>>, vector<8x128xf32>
    tpu.vector_store %arg4[%c0_8, %c0_9], %16 {strides = array<i32>} : memref<8x128xf32, #tpu.memory_space<vmem>>, vector<8x128xf32>,
    %c0_i32_10 = arith.constant 0 : i32
    %18 = arith.cmpi eq, %arg0, %c0_i32_10 : i32
    %19 = arith.extui %18 : i1 to i32
    %c0_i32_11 = arith.constant 0 : i32
    %20 = arith.cmpi ne, %19, %c0_i32_11 : i32
    scf.if %20 {
      %c0_12 = arith.constant 0 : index
      %c0_13 = arith.constant 0 : index
      %21 = vector.load %arg4[%c0_12, %c0_13] : memref<8x128xf32, #tpu.memory_space<vmem>>, vector<8x128xf32>
      %22 = vector.shape_cast %21 : vector<8x128xf32> to vector<1x8x128xf32>
      %cst_14 = arith.constant dense<0.000000e+00> : vector<1xf32>
      %23 = vector.multi_reduction <add>, %22, %cst_14 [1, 2] : vector<1x8x128xf32> to vector<1xf32>
      %24 = vector.shape_cast %23 : vector<1xf32> to vector<1x1x1xf32>
      %25 = vector.extract %24[0, 0, 0] : f32 from vector<1x1x1xf32>
      %c0_15 = arith.constant 0 : index
      %c0_16 = arith.constant 0 : index
      %26 = memref.load %arg3[%c0_15, %c0_16] : memref<1x1xf32, #tpu.memory_space<smem>>
      memref.store %25, %arg3[%c0_15, %c0_16] : memref<1x1xf32, #tpu.memory_space<smem>>
    } else {
    }
    return
  }
  func.func @transform_0(%arg0: i32) -> (i32, i32) {
    %c0_i32 = arith.constant 0 : i32
    %c0_i32_0 = arith.constant 0 : i32
    return %arg0, %c0_i32 : i32, i32
  }
  func.func @transform_1(%arg0: i32) -> (i32, i32) {
    %c0_i32 = arith.constant 0 : i32
    %c0_i32_0 = arith.constant 0 : i32
    return %arg0, %c0_i32 : i32, i32
  }
  func.func @transform_2(%arg0: i32) -> (i32, i32) {
    %c0_i32 = arith.constant 0 : i32
    %c0_i32_0 = arith.constant 0 : i32
    %c0_i32_1 = arith.constant 0 : i32
    return %c0_i32, %c0_i32_0 : i32, i32
  }
}

</mosaic_0001>

<llo_original>
// kernel: rmsle_loss.1
$region0: #{rmsle_loss.1}
  #allocation0 [shape = 'u32[]', space=smem, size = 0x4, offset = 0x4, fixed_abs, tag = 'smem constant byte address 0x4 - core index']
  #allocation1 [shape = 'u32[144,128]{1,0:T(1,128)}', space=vmem, size = 0x12000, scoped, tag = 'internal scratch']
  #allocation2 [shape = 'f32[8,128]{1,0:T(8,128)}', space=vmem, size = 0x1000, scoped, tag = 'scratch operand']
  %s0 = inlined_call_operand.vmem [shape: f32[16,128], index: 0, kind: input, shape index: {}]
  %s1 = inlined_call_operand.vmem [shape: f32[16,128], index: 1, kind: input, shape index: {}]
  %s2 = inlined_call_operand.hbm [shape: f32[1,1], index: 2, kind: output, shape index: {}]
  %s3 = sld [smem:[#allocation0]]
  $region26: #{rmsle_loss.1} parent=0
    _
  %s5 = ssub.s32 1, %s3
  %s6 = scalar_select 0, %s5, %s3
  $region1: #{rmsle_loss.1} parent=0
    #allocation3 [shape = 'u8[512]{0}', space=smem, size = 0x200, scoped, tag = 'output window, operand 0, single buffered']
    #allocation4 [shape = 's32[1]{0}', space=sflag, size = 0x4, scoped, tag = 'scoped memory for rmsle_loss.1']
    %7 = vsyncpa [#allocation4], 0
    // Predicated region
    $region2: #{rmsle_loss.1} parent=1 // pred_check
      _
    $region3: #{rmsle_loss.1} parent=1 // pred_check_branch
      %9 = sbr.rel (0) target = $region5
    $region4: #{rmsle_loss.1} parent=1 // pred_region
      _
    $region5: #{rmsle_loss.1} parent=1 // pred_fallthru
      _
    // Predicated region
    $region6: #{rmsle_loss.1} parent=1 // pred_check
      _
    $region7: #{rmsle_loss.1} parent=1 // pred_check_branch
      %11 = sbr.rel (0) target = $region9
    $region8: #{rmsle_loss.1} parent=1 // pred_region
      _
    $region9: #{rmsle_loss.1} parent=1 // pred_fallthru
      _
    %p12 = scmp.eq.s32.totalorder 0, 0
    // Predicated region
    $region10: #{rmsle_loss.1} parent=1 // pred_check
      %p13 = pneg %p12
    $region11: #{rmsle_loss.1} parent=1 // pred_check_branch
      %15 = sbr.rel (%p13) target = $region13
    $region12: #{rmsle_loss.1} parent=1 // pred_region
      %16 = vst [vmem:[#allocation2] sm:$0xff] 0.0
    $region13: #{rmsle_loss.1} parent=1 // pred_fallthru
      _
    %v17 = vld [vmem:[%s0] sm:$0xff]
    %v18 = vld [vmem:[%s0 + $0x8] sm:$0xff]
    %v19 = vld [vmem:[%s1] sm:$0xff]
    %v20 = vld [vmem:[%s1 + $0x8] sm:$0xff]
    %v21 = vadd.f32 %v17, 1.0
    %v22 = vadd.f32 %v18, 1.0
    %v23 = vlog2.pop %v21
    %v24 = vmul.f32 %v23, 0.6931472
    %v25 = vlog2.pop %v22
    %v26 = vmul.f32 %v25, 0.6931472
    %v27 = vadd.f32 %v19, 1.0
    %v28 = vadd.f32 %v20, 1.0
    %v29 = vlog2.pop %v27
    %v30 = vmul.f32 %v29, 0.6931472
    %v31 = vlog2.pop %v28
    %v32 = vmul.f32 %v31, 0.6931472
    %v33 = vsub.f32 %v24, %v30
    %v34 = vsub.f32 %v26, %v32
    %v35 = vmul.f32 %v33, %v33
    %v36 = vmul.f32 %v34, %v34
    %v37 = vadd.f32 %v35, %v36
    %v38 = vld [vmem:[#allocation2] sm:$0xff]
    %v39 = vadd.f32 %v38, %v37
    %40 = vst [vmem:[#allocation2] sm:$0xff] %v39
    // Predicated region
    $region14: #{rmsle_loss.1} parent=1 // pred_check
      %p41 = pneg %p12
    $region15: #{rmsle_loss.1} parent=1 // pred_check_branch
      %43 = sbr.rel (%p41) target = $region17
    $region16: #{rmsle_loss.1} parent=1 // pred_region
      %v44 = vld [vmem:[#allocation2] sm:$0xff]
      %45 = vadd.xlane.f32.xlu0 %v44
      %v46 = vpop.xlane.xlu0 %45
      %v47 = vrot.slane %v46, 4
      %v48 = vadd.f32 %v46, %v47
      %v49 = vrot.slane %v48, 2
      %v50 = vadd.f32 %v48, %v49
      %v51 = vrot.slane %v50, 1
      %v52 = vadd.f32 %v50, %v51
      %s53 = vtos %v52
      %s54 = scalar_lea.smem [#allocation3], 0
      %55 = sst [smem:[%s54]] %s53
    $region17: #{rmsle_loss.1} parent=1 // pred_fallthru
      _
    // Predicated region
    $region18: #{rmsle_loss.1} parent=1 // pred_check
      _
    $region19: #{rmsle_loss.1} parent=1 // pred_check_branch
      %57 = sbr.rel (0) target = $region21
    $region20: #{rmsle_loss.1} parent=1 // pred_region
      %s59 = ssub.s32 16, 16
      %60 = vsyncadd [#allocation4], %s59
      %63 = dma.smem_to_hbm [#allocation3], 16, %s2, [#allocation4]
    $region21: #{rmsle_loss.1} parent=1 // pred_fallthru
      _
    // Predicated region
    $region22: #{rmsle_loss.1} parent=1 // pred_check
      _
    $region23: #{rmsle_loss.1} parent=1 // pred_check_branch
      %65 = sbr.rel (0) target = $region25
    $region24: #{rmsle_loss.1} parent=1 // pred_region
      %66 = dma.done [#allocation4], 16
    $region25: #{rmsle_loss.1} parent=1 // pred_fallthru
      _
    %67 = sfence
    %68 = vsyncpa [#allocation4], 1

</llo_original>
